<compile_context>
chip_gen: v5e
topology: v5e:2x2
jax: 0.10.0
libtpu: 0.0.40
codegen_flags: <defaults>
</compile_context>

<pallas_src>
import jax
import jax.numpy as jnp
from jax import lax
from jax.experimental import pallas as pl
from jax.experimental.pallas import tpu as pltpu


def _make_kernel(batch, train_batchsize):
    """Kernel with true batch size and train_batchsize baked in as constants."""
    inv_b = float(1.0 / batch)
    bs = float(train_batchsize)

    # Slab row layout (both slabs share it):
    #   rows 0:3   -> angle            (xa) / euler_angle_gt (xb)
    #   rows 3:8   -> attribute_gt[:,1:6] (xa) / zeros        (xb)
    #   rows 8:    -> landmark_gt      (xa) / landmarks       (xb)
    # so d = xa - xb holds [angle-euler | attrs | lmk_gt-lmk] row-aligned,
    # with no in-kernel slicing or rolling needed.
    def kernel(xa_ref, xb_ref, out_ref, acc_ref, s2_ref):
        fh = xa_ref.shape[0]          # 8 + L
        tb = xa_ref.shape[1]          # batch tile (multiple of 128)

        @pl.when(pl.program_id(0) == 0)
        def _init():
            acc_ref[...] = jnp.zeros_like(acc_ref)
            s2_ref[...] = jnp.zeros_like(s2_ref)

        d = xa_ref[...] - xb_ref[...]              # (fh, tb)
        dsq = d * d                                # (fh, tb)
        # Only the 3 angle rows need cos; rows 0:8 is an aligned sublane group,
        # so the EUP sees 1 vreg per 128 batch lanes.
        c8 = 1.0 - jnp.cos(d[0:8, :])              # (8, tb)

        # --- per-sample feature reductions on the MXU -----------------------
        # E = [c8 ; dsq]; selector row 0 picks the 3 angle rows of c8,
        # selector row 1 picks the landmark rows of dsq (E rows >= 16).
        e = jnp.concatenate([c8, dsq], axis=0)     # (8 + fh, tb)
        ke = 8 + fh
        r = lax.broadcasted_iota(jnp.int32, (8, ke), 0)
        c = lax.broadcasted_iota(jnp.int32, (8, ke), 1)
        sel = jnp.where((r == 0) & (c < 3), 1.0,
                        jnp.where((r == 1) & (c >= 16), 1.0, 0.0)
                        ).astype(jnp.float32)      # (8, 8 + fh)
        p = jnp.dot(sel, e, preferred_element_type=jnp.float32,
                    precision=jax.lax.Precision.HIGHEST)        # (8, tb)
        w_ang = p[0:1, :]                          # (1, tb)
        l2 = p[1:2, :]                             # (1, tb)
        w = w_ang * l2                             # (1, tb)

        # --- per-tile batch reductions on the MXU ---------------------------
        # row 0: ones -> column sums of d (attrs colsum lives in rows 3:8)
        # row 1: w    -> t[f] = sum_b w_ang*l2*d[f, b]
        ridx = lax.broadcasted_iota(jnp.int32, (2, tb), 0)
        w2 = jnp.where(ridx == 0, 1.0, w).astype(jnp.float32)   # (2, tb)
        part = jnp.einsum('kb,fb->kf', w2, d,
                          preferred_element_type=jnp.float32,
                          precision=jax.lax.Precision.HIGHEST)  # (2, fh)
        acc_ref[...] += part
        s2_ref[...] += jnp.sum(l2, axis=1, keepdims=True)       # (1, 1)

        @pl.when(pl.program_id(0) == pl.num_programs(0) - 1)
        def _finalize():
            a = acc_ref[...]                       # (2, fh)
            colsum = a[0:1, :]
            t = a[1:2, :]
            fidx = lax.broadcasted_iota(jnp.int32, (1, fh), 1)
            attr_mask = (fidx >= 3) & (fidx < 8)   # attrs = slab rows 3..7
            mean = colsum * inv_b                  # full-batch mean
            pos = mean > 0.0
            safe = jnp.where(pos, mean, 1.0)       # no transient inf
            mr = jnp.where(pos, pl.reciprocal(safe), bs)
            s1 = jnp.sum(jnp.where(attr_mask, mr * t, 0.0),
                         axis=1, keepdims=True) * inv_b          # (1, 1)
            s2 = s2_ref[...] * inv_b                              # (1, 1)
            oc = lax.broadcasted_iota(jnp.int32, (1, 2), 1)
            out_ref[...] = jnp.where(oc == 0, s1, s2)             # [loss, l2]

    return kernel


def landmark_cost(attribute_gt, landmark_gt, euler_angle_gt, angle, landmarks,
                  train_batchsize, *, tile_b=None):
    """Returns (mean(weight_angle*weight_attribute*l2), mean(l2)) as scalars."""
    B, L = landmark_gt.shape
    fh = 8 + L

    # ---- layout plumbing: pack into two lane-dense (fh, B) slabs -----------
    attrs5 = attribute_gt[:, 1:6].astype(jnp.float32)            # (B, 5)
    xa = jnp.concatenate([angle.astype(jnp.float32),
                          attrs5,
                          landmark_gt.astype(jnp.float32)], axis=1)   # (B, fh)
    xb = jnp.concatenate([euler_angle_gt.astype(jnp.float32),
                          jnp.zeros_like(attrs5),
                          landmarks.astype(jnp.float32)], axis=1)     # (B, fh)
    xa = xa.T                                                     # (fh, B)
    xb = xb.T

    if tile_b is None:
        tile_b = min(1024, 128 * ((B + 127) // 128))
    assert tile_b % 128 == 0, "batch tile must be a multiple of 128 lanes"
    b_pad = tile_b * ((B + tile_b - 1) // tile_b)
    if b_pad != B:
        # Zero padding contributes exactly 0 to every accumulator.
        xa = jnp.pad(xa, ((0, 0), (0, b_pad - B)))
        xb = jnp.pad(xb, ((0, 0), (0, b_pad - B)))

    kernel = _make_kernel(batch=B, train_batchsize=train_batchsize)

    out = pl.pallas_call(
        kernel,
        out_shape=jax.ShapeDtypeStruct((1, 2), jnp.float32),
        grid_spec=pltpu.PrefetchScalarGridSpec(
            num_scalar_prefetch=0,
            grid=(b_pad // tile_b,),
            in_specs=[pl.BlockSpec((fh, tile_b), lambda i: (0, i)),
                      pl.BlockSpec((fh, tile_b), lambda i: (0, i))],
            out_specs=pl.BlockSpec((1, 2), lambda i: (0, 0)),
            scratch_shapes=[pltpu.VMEM((2, fh), jnp.float32),   # [colsum; t]
                            pltpu.VMEM((1, 1), jnp.float32)],   # sum(l2)
        ),
        compiler_params=pltpu.CompilerParams(
            # Reduction axis with a shared accumulator -> must be "arbitrary".
            dimension_semantics=("arbitrary",)),
    )(xa, xb)
    return out[0, 0], out[0, 1]


def _reference(attribute_gt, landmark_gt, euler_angle_gt, angle, landmarks, bs):
    """Pure-JAX mirror of the torch forward."""
    attrs = attribute_gt[:, 1:6].astype(jnp.float32)
    mr = jnp.mean(attrs, axis=0)
    mr = jnp.where(mr > 0, 1.0 / mr, bs)
    w_attr = jnp.sum(attrs * mr, axis=1)
    w_ang = jnp.sum(1.0 - jnp.cos(angle - euler_angle_gt), axis=1)
    l2 = jnp.sum((landmark_gt - landmarks) ** 2, axis=1)
    return jnp.mean(w_ang * w_attr * l2), jnp.mean(l2)


def _run_case(key, B, A, L, tile_b=None):
    k1, k2, k3, k4, k5 = jax.random.split(key, 5)
    attribute_gt = (jax.random.uniform(k1, (B, A)) > 0.5).astype(jnp.int32)
    landmark_gt = jax.random.normal(k2, (B, L), dtype=jnp.float32)
    euler_angle_gt = jax.random.normal(k3, (B, 3), dtype=jnp.float32)
    angle = jax.random.normal(k4, (B, 3), dtype=jnp.float32)
    landmarks = jax.random.normal(k5, (B, L), dtype=jnp.float32)
    bs = float(B)

    loss, l2_mean = landmark_cost(attribute_gt, landmark_gt, euler_angle_gt,
                                  angle, landmarks, bs, tile_b=tile_b)
    jax.block_until_ready((loss, l2_mean))

    ref1, ref2 = _reference(attribute_gt, landmark_gt, euler_angle_gt,
                            angle, landmarks, bs)
    assert jnp.allclose(loss, ref1, rtol=1e-5, atol=1e-5), (loss, ref1)
    assert jnp.allclose(l2_mean, ref2, rtol=1e-5, atol=1e-5), (l2_mean, ref2)


if __name__ == "__main__":
    key = jax.random.PRNGKey(0)
    k1, k2 = jax.random.split(key)
    # Small case: single tile, exercises batch zero-padding (8 -> 128 lanes).
    _run_case(k1, B=8, A=6, L=16)
    # Multi-tile case: exercises grid accumulation + last-tile finalize.
    _run_case(k2, B=300, A=8, L=16, tile_b=128)
    print("KERNEL_OK")
</pallas_src>

<mosaic_0001>
module attributes {stable_mosaic.version = 11 : i64} {
  func.func @kernel(%arg0: i32, %arg1: memref<24x128xf32, #tpu.memory_space<vmem>>, %arg2: memref<24x128xf32, #tpu.memory_space<vmem>>, %arg3: memref<1x2xf32, #tpu.memory_space<vmem>>, %arg4: memref<2x24xf32, #tpu.memory_space<vmem>>, %arg5: memref<1x1xf32, #tpu.memory_space<vmem>>) attributes {dimension_semantics = [#tpu.dimension_semantics<arbitrary>], iteration_bounds = array<i64: 1>, scalar_prefetch = 0 : i64, scratch_operands = 2 : i64, tpu.core_type = #tpu.core_type<tc>, window_params = [{transform_indices = @transform_0, window_bounds = array<i64: 24, 128>}, {transform_indices = @transform_1, window_bounds = array<i64: 24, 128>}, {pipeline_mode = #tpu.pipeline_mode<synchronous>, transform_indices = @transform_2, window_bounds = array<i64: 1, 2>}]} {
    %c0_i32 = arith.constant 0 : i32
    %0 = arith.cmpi eq, %arg0, %c0_i32 : i32
    %1 = arith.extui %0 : i1 to i32
    %c0_i32_0 = arith.constant 0 : i32
    %2 = arith.cmpi ne, %1, %c0_i32_0 : i32
    scf.if %2 {
      %cst_23 = arith.constant 0.000000e+00 : f32
      %52 = vector.broadcast %cst_23 : f32 to vector<2x24xf32>
      %c0_24 = arith.constant 0 : index
      %c0_25 = arith.constant 0 : index
      %53 = vector.load %arg4[%c0_24, %c0_25] : memref<2x24xf32, #tpu.memory_space<vmem>>, vector<2x24xf32>
      tpu.vector_store %arg4[%c0_24, %c0_25], %52 {strides = array<i32>} : memref<2x24xf32, #tpu.memory_space<vmem>>, vector<2x24xf32>,
      %cst_26 = arith.constant 0.000000e+00 : f32
      %54 = vector.broadcast %cst_26 : f32 to vector<1x1xf32>
      %c0_27 = arith.constant 0 : index
      %c0_28 = arith.constant 0 : index
      %55 = vector.load %arg5[%c0_27, %c0_28] : memref<1x1xf32, #tpu.memory_space<vmem>>, vector<1x1xf32>
      tpu.vector_store %arg5[%c0_27, %c0_28], %54 {strides = array<i32>} : memref<1x1xf32, #tpu.memory_space<vmem>>, vector<1x1xf32>,
    } else {
    }
    %c0 = arith.constant 0 : index
    %c0_1 = arith.constant 0 : index
    %3 = vector.load %arg1[%c0, %c0_1] : memref<24x128xf32, #tpu.memory_space<vmem>>, vector<24x128xf32>
    %c0_2 = arith.constant 0 : index
    %c0_3 = arith.constant 0 : index
    %4 = vector.load %arg2[%c0_2, %c0_3] : memref<24x128xf32, #tpu.memory_space<vmem>>, vector<24x128xf32>
    %5 = arith.subf %3, %4 : vector<24x128xf32>
    %6 = arith.mulf %5, %5 : vector<24x128xf32>
    %7 = vector.extract_strided_slice %5 {offsets = [0, 0], sizes = [8, 128], strides = [1, 1]} : vector<24x128xf32> to vector<8x128xf32>
    %8 = math.cos %7 : vector<8x128xf32>
    %cst = arith.constant 1.000000e+00 : f32
    %9 = vector.broadcast %cst : f32 to vector<8x128xf32>
    %10 = arith.subf %9, %8 : vector<8x128xf32>
    %11 = tpu.concatenate %10, %6 in 0 : vector<8x128xf32>, vector<24x128xf32> -> vector<32x128xf32>
    %12 = tpu.iota {dimensions = array<i32: 0>} : vector<8x32xi32>
    %13 = tpu.iota {dimensions = array<i32: 1>} : vector<8x32xi32>
    %c0_i32_4 = arith.constant 0 : i32
    %14 = vector.broadcast %c0_i32_4 : i32 to vector<8x32xi32>
    %15 = arith.cmpi eq, %12, %14 : vector<8x32xi32>
    %c3_i32 = arith.constant 3 : i32
    %16 = vector.broadcast %c3_i32 : i32 to vector<8x32xi32>
    %17 = arith.cmpi slt, %13, %16 : vector<8x32xi32>
    %18 = arith.andi %15, %17 : vector<8x32xi1>
    %c1_i32 = arith.constant 1 : i32
    %19 = vector.broadcast %c1_i32 : i32 to vector<8x32xi32>
    %20 = arith.cmpi eq, %12, %19 : vector<8x32xi32>
    %c16_i32 = arith.constant 16 : i32
    %21 = vector.broadcast %c16_i32 : i32 to vector<8x32xi32>
    %22 = arith.cmpi sge, %13, %21 : vector<8x32xi32>
    %23 = arith.andi %20, %22 : vector<8x32xi1>
    %cst_5 = arith.constant 1.000000e+00 : f32
    %cst_6 = arith.constant 0.000000e+00 : f32
    %24 = vector.broadcast %cst_5 : f32 to vector<8x32xf32>
    %25 = vector.broadcast %cst_6 : f32 to vector<8x32xf32>
    %26 = arith.select %23, %24, %25 : vector<8x32xi1>, vector<8x32xf32>
    %cst_7 = arith.constant 1.000000e+00 : f32
    %27 = vector.broadcast %cst_7 : f32 to vector<8x32xf32>
    %28 = arith.select %18, %27, %26 : vector<8x32xi1>, vector<8x32xf32>
    %cst_8 = arith.constant dense<0.000000e+00> : vector<8x128xf32>
    %29 = tpu.matmul %28, %11, %cst_8 {dimension_numbers = #tpu.dot_dimension_numbers<[1], [0], [0], [1], [0, 0, 1, 1], [], []>, precision = #tpu.contract_precision<fp32>} : vector<8x32xf32>, vector<32x128xf32>, vector<8x128xf32> -> vector<8x128xf32>
    %30 = vector.extract_strided_slice %29 {offsets = [0, 0], sizes = [1, 128], strides = [1, 1]} : vector<8x128xf32> to vector<1x128xf32>
    %31 = vector.extract_strided_slice %29 {offsets = [1, 0], sizes = [1, 128], strides = [1, 1]} : vector<8x128xf32> to vector<1x128xf32>
    %32 = arith.mulf %30, %31 : vector<1x128xf32>
    %33 = tpu.iota {dimensions = array<i32: 0>} : vector<2x128xi32>
    %c0_i32_9 = arith.constant 0 : i32
    %34 = vector.broadcast %c0_i32_9 : i32 to vector<2x128xi32>
    %35 = arith.cmpi eq, %33, %34 : vector<2x128xi32>
    %cst_10 = arith.constant 1.000000e+00 : f32
    %36 = vector.broadcast %cst_10 : f32 to vector<2x128xf32>
    %37 = vector.shape_cast %32 : vector<1x128xf32> to vector<1x128xf32>
    %38 = vector.broadcast %37 : vector<1x128xf32> to vector<2x128xf32>
    %39 = arith.select %35, %36, %38 : vector<2x128xi1>, vector<2x128xf32>
    "tpu.trace_start"() <{level = 10 : i32, message = "kb,fb->kf"}> : () -> ()
    %cst_11 = arith.constant dense<0.000000e+00> : vector<2x24xf32>
    %40 = tpu.matmul %39, %5, %cst_11 {dimension_numbers = #tpu.dot_dimension_numbers<[1], [1], [0], [0], [0, 0, 1, 0], [], []>, precision = #tpu.contract_precision<fp32>} : vector<2x128xf32>, vector<24x128xf32>, vector<2x24xf32> -> vector<2x24xf32>
    "tpu.trace_stop"() : () -> ()
    %c0_12 = arith.constant 0 : index
    %c0_13 = arith.constant 0 : index
    %41 = vector.load %arg4[%c0_12, %c0_13] : memref<2x24xf32, #tpu.memory_space<vmem>>, vector<2x24xf32>
    %42 = arith.addf %41, %40 : vector<2x24xf32>
    %c0_14 = arith.constant 0 : index
    %c0_15 = arith.constant 0 : index
    %43 = vector.load %arg4[%c0_14, %c0_15] : memref<2x24xf32, #tpu.memory_space<vmem>>, vector<2x24xf32>
    tpu.vector_store %arg4[%c0_14, %c0_15], %42 {strides = array<i32>} : memref<2x24xf32, #tpu.memory_space<vmem>>, vector<2x24xf32>,
    %c0_16 = arith.constant 0 : index
    %c0_17 = arith.constant 0 : index
    %44 = vector.load %arg5[%c0_16, %c0_17] : memref<1x1xf32, #tpu.memory_space<vmem>>, vector<1x1xf32>
    %cst_18 = arith.constant dense<0.000000e+00> : vector<1xf32>
    %45 = vector.multi_reduction <add>, %31, %cst_18 [1] : vector<1x128xf32> to vector<1xf32>
    %46 = vector.shape_cast %45 : vector<1xf32> to vector<1x1xf32>
    %47 = arith.addf %44, %46 : vector<1x1xf32>
    %c0_19 = arith.constant 0 : index
    %c0_20 = arith.constant 0 : index
    %48 = vector.load %arg5[%c0_19, %c0_20] : memref<1x1xf32, #tpu.memory_space<vmem>>, vector<1x1xf32>
    tpu.vector_store %arg5[%c0_19, %c0_20], %47 {strides = array<i32>} : memref<1x1xf32, #tpu.memory_space<vmem>>, vector<1x1xf32>,
    %c0_i32_21 = arith.constant 0 : i32
    %49 = arith.cmpi eq, %arg0, %c0_i32_21 : i32
    %50 = arith.extui %49 : i1 to i32
    %c0_i32_22 = arith.constant 0 : i32
    %51 = arith.cmpi ne, %50, %c0_i32_22 : i32
    scf.if %51 {
      %c0_23 = arith.constant 0 : index
      %c0_24 = arith.constant 0 : index
      %52 = vector.load %arg4[%c0_23, %c0_24] : memref<2x24xf32, #tpu.memory_space<vmem>>, vector<2x24xf32>
      %53 = vector.extract_strided_slice %52 {offsets = [0, 0], sizes = [1, 24], strides = [1, 1]} : vector<2x24xf32> to vector<1x24xf32>
      %54 = vector.extract_strided_slice %52 {offsets = [1, 0], sizes = [1, 24], strides = [1, 1]} : vector<2x24xf32> to vector<1x24xf32>
      %55 = tpu.iota {dimensions = array<i32: 1>} : vector<1x24xi32>
      %c3_i32_25 = arith.constant 3 : i32
      %56 = vector.broadcast %c3_i32_25 : i32 to vector<1x24xi32>
      %57 = arith.cmpi sge, %55, %56 : vector<1x24xi32>
      %c8_i32 = arith.constant 8 : i32
      %58 = vector.broadcast %c8_i32 : i32 to vector<1x24xi32>
      %59 = arith.cmpi slt, %55, %58 : vector<1x24xi32>
      %60 = arith.andi %57, %59 : vector<1x24xi1>
      %cst_26 = arith.constant 1.250000e-01 : f32
      %61 = vector.broadcast %cst_26 : f32 to vector<1x24xf32>
      %62 = arith.mulf %53, %61 : vector<1x24xf32>
      %cst_27 = arith.constant 0.000000e+00 : f32
      %63 = vector.broadcast %cst_27 : f32 to vector<1x24xf32>
      %64 = arith.cmpf ogt, %62, %63 : vector<1x24xf32>
      %cst_28 = arith.constant 1.000000e+00 : f32
      %65 = vector.broadcast %cst_28 : f32 to vector<1x24xf32>
      %66 = arith.select %64, %62, %65 : vector<1x24xi1>, vector<1x24xf32>
      %67 = tpu.reciprocal %66 : vector<1x24xf32> -> vector<1x24xf32>
      %cst_29 = arith.constant 8.000000e+00 : f32
      %68 = vector.broadcast %cst_29 : f32 to vector<1x24xf32>
      %69 = arith.select %64, %67, %68 : vector<1x24xi1>, vector<1x24xf32>
      %70 = arith.mulf %69, %54 : vector<1x24xf32>
      %cst_30 = arith.constant 0.000000e+00 : f32
      %71 = vector.broadcast %cst_30 : f32 to vector<1x24xf32>
      %72 = arith.select %60, %70, %71 : vector<1x24xi1>, vector<1x24xf32>
      %cst_31 = arith.constant dense<0.000000e+00> : vector<1xf32>
      %73 = vector.multi_reduction <add>, %72, %cst_31 [1] : vector<1x24xf32> to vector<1xf32>
      %74 = vector.shape_cast %73 : vector<1xf32> to vector<1x1xf32>
      %cst_32 = arith.constant 1.250000e-01 : f32
      %75 = vector.broadcast %cst_32 : f32 to vector<1x1xf32>
      %76 = arith.mulf %74, %75 : vector<1x1xf32>
      %c0_33 = arith.constant 0 : index
      %c0_34 = arith.constant 0 : index
      %77 = vector.load %arg5[%c0_33, %c0_34] : memref<1x1xf32, #tpu.memory_space<vmem>>, vector<1x1xf32>
      %cst_35 = arith.constant 1.250000e-01 : f32
      %78 = vector.broadcast %cst_35 : f32 to vector<1x1xf32>
      %79 = arith.mulf %77, %78 : vector<1x1xf32>
      %80 = tpu.iota {dimensions = array<i32: 1>} : vector<1x2xi32>
      %c0_i32_36 = arith.constant 0 : i32
      %81 = vector.broadcast %c0_i32_36 : i32 to vector<1x2xi32>
      %82 = arith.cmpi eq, %80, %81 : vector<1x2xi32>
      %83 = vector.shape_cast %76 : vector<1x1xf32> to vector<1x1xf32>
      %84 = vector.broadcast %83 : vector<1x1xf32> to vector<1x2xf32>
      %85 = vector.shape_cast %79 : vector<1x1xf32> to vector<1x1xf32>
      %86 = vector.broadcast %85 : vector<1x1xf32> to vector<1x2xf32>
      %87 = arith.select %82, %84, %86 : vector<1x2xi1>, vector<1x2xf32>
      %c0_37 = arith.constant 0 : index
      %c0_38 = arith.constant 0 : index
      %88 = vector.load %arg3[%c0_37, %c0_38] : memref<1x2xf32, #tpu.memory_space<vmem>>, vector<1x2xf32>
      tpu.vector_store %arg3[%c0_37, %c0_38], %87 {strides = array<i32>} : memref<1x2xf32, #tpu.memory_space<vmem>>, vector<1x2xf32>,
    } else {
    }
    return
  }
  func.func @transform_0(%arg0: i32) -> (i32, i32) {
    %c0_i32 = arith.constant 0 : i32
    %c0_i32_0 = arith.constant 0 : i32
    return %c0_i32, %arg0 : i32, i32
  }
  func.func @transform_1(%arg0: i32) -> (i32, i32) {
    %c0_i32 = arith.constant 0 : i32
    %c0_i32_0 = arith.constant 0 : i32
    return %c0_i32, %arg0 : i32, i32
  }
  func.func @transform_2(%arg0: i32) -> (i32, i32) {
    %c0_i32 = arith.constant 0 : i32
    %c0_i32_0 = arith.constant 0 : i32
    %c0_i32_1 = arith.constant 0 : i32
    return %c0_i32, %c0_i32_0 : i32, i32
  }
}

</mosaic_0001>

<llo_original>
// kernel: tpu_custom_call.1
$region0: #{tpu_custom_call.1}
  #allocation0 [shape = 'u32[]', space=smem, size = 0x4, offset = 0x4, fixed_abs, tag = 'smem constant byte address 0x4 - core index']
  #allocation1 [shape = 'u32[72,128]{1,0:T(1,128)}', space=vmem, size = 0x9000, scoped, tag = 'internal scratch']
  #allocation2 [shape = 'f32[2,24]{1,0:T(2,128)}', space=vmem, size = 0x400, scoped, tag = 'scratch operand']
  #allocation3 [shape = 'f32[1,1]{1,0:T(1,128)}', space=vmem, size = 0x200, scoped, tag = 'scratch operand']
  %s0 = inlined_call_operand.hbm [shape: f32[24,128], index: 0, kind: input, shape index: {}]
  %s1 = inlined_call_operand.hbm [shape: f32[24,128], index: 1, kind: input, shape index: {}]
  %s2 = inlined_call_operand.hbm [shape: f32[1,2], index: 2, kind: output, shape index: {}]
  %s3 = sld [smem:[#allocation0]]
  $region34: #{tpu_custom_call.1} parent=0
    _
  %s5 = ssub.s32 1, %s3
  %s6 = scalar_select 0, %s5, %s3
  $region1: #{tpu_custom_call.1} parent=0
    #allocation4 [shape = 'u8[12288]{0}', space=vmem, size = 0x3000, scoped, tag = 'input window, operand 0, single buffered']
    #allocation5 [shape = 's32[1]{0}', space=sflag, size = 0x4, scoped, tag = 'scoped memory for tpu_custom_call.1']
    #allocation6 [shape = 's32[1]{0}', space=sflag, size = 0x4, scoped, tag = 'scoped memory for tpu_custom_call.1']
    #allocation7 [shape = 'u8[12288]{0}', space=vmem, size = 0x3000, scoped, tag = 'input window, operand 1, single buffered']
    #allocation8 [shape = 's32[1]{0}', space=sflag, size = 0x4, scoped, tag = 'scoped memory for tpu_custom_call.1']
    #allocation9 [shape = 'u8[512]{0}', space=vmem, size = 0x400, scoped, tag = 'output window, operand 0, single buffered']
    %7 = vsyncpa [#allocation5], 0
    %8 = vsyncpa [#allocation8], 0
    %9 = vsyncpa [#allocation6], 0
    // Predicated region
    $region2: #{tpu_custom_call.1} parent=1 // pred_check
      _
    $region3: #{tpu_custom_call.1} parent=1 // pred_check_branch
      %11 = sbr.rel (0) target = $region5
    $region4: #{tpu_custom_call.1} parent=1 // pred_region
      %13 = vsyncadd [#allocation5], 0
      %s14 = sshll.u32 %s0, 4
      %s15 = int_to_ptr.hbm [resolvable:$true] %s14
      %s16 = sshll.u32 [#allocation4], 4
      %s17 = int_to_ptr.vmem [resolvable:$true] %s16
      %22 = dma.hbm_to_vmem [thread:$0]  %s15, 384, %s17, [#allocation5], 128, 128, 8
    $region5: #{tpu_custom_call.1} parent=1 // pred_fallthru
      _
    // Predicated region
    $region6: #{tpu_custom_call.1} parent=1 // pred_check
      _
    $region7: #{tpu_custom_call.1} parent=1 // pred_check_branch
      %24 = sbr.rel (0) target = $region9
    $region8: #{tpu_custom_call.1} parent=1 // pred_region
      %26 = vsyncadd [#allocation8], 0
      %s27 = sshll.u32 %s1, 4
      %s28 = int_to_ptr.hbm [resolvable:$true] %s27
      %s29 = sshll.u32 [#allocation7], 4
      %s30 = int_to_ptr.vmem [resolvable:$true] %s29
      %35 = dma.hbm_to_vmem [thread:$0]  %s28, 384, %s30, [#allocation8], 128, 128, 8
    $region9: #{tpu_custom_call.1} parent=1 // pred_fallthru
      _
    // Predicated region
    $region10: #{tpu_custom_call.1} parent=1 // pred_check
      _
    $region11: #{tpu_custom_call.1} parent=1 // pred_check_branch
      %37 = sbr.rel (0) target = $region13
    $region12: #{tpu_custom_call.1} parent=1 // pred_region
      %39 = dma.done [#allocation5], 384
    $region13: #{tpu_custom_call.1} parent=1 // pred_fallthru
      _
    // Predicated region
    $region14: #{tpu_custom_call.1} parent=1 // pred_check
      _
    $region15: #{tpu_custom_call.1} parent=1 // pred_check_branch
      %41 = sbr.rel (0) target = $region17
    $region16: #{tpu_custom_call.1} parent=1 // pred_region
      %43 = dma.done [#allocation8], 384
    $region17: #{tpu_custom_call.1} parent=1 // pred_fallthru
      _
    %p44 = scmp.eq.s32.totalorder 0, 0
    // Predicated region
    $region18: #{tpu_custom_call.1} parent=1 // pred_check
      %p45 = pneg %p44
    $region19: #{tpu_custom_call.1} parent=1 // pred_check_branch
      %47 = sbr.rel (%p45) target = $region21
    $region20: #{tpu_custom_call.1} parent=1 // pred_region
      %vm48 = vcmask 189440
      %49 = vst.msk [vmem:[#allocation2] sm:$0x3] %vm48, 0.0
      %vm50 = vcmask 0
      %51 = vst.msk [vmem:[#allocation3] sm:$0x1] %vm50, 0.0
    $region21: #{tpu_custom_call.1} parent=1 // pred_fallthru
      _
    %v52 = vld [vmem:[#allocation4] sm:$0xff]
    %v53 = vld [vmem:[#allocation4 + $0x8] sm:$0xff]
    %v54 = vld [vmem:[#allocation4 + $0x10] sm:$0xff]
    %v55 = vld [vmem:[#allocation7] sm:$0xff]
    %v56 = vld [vmem:[#allocation7 + $0x8] sm:$0xff]
    %v57 = vld [vmem:[#allocation7 + $0x10] sm:$0xff]
    %v58 = vsub.f32 %v52, %v55
    %v59 = vsub.f32 %v53, %v56
    %v60 = vsub.f32 %v54, %v57
    %v61 = vmul.f32 %v58, %v58
    %v62 = vmul.f32 %v59, %v59
    %v63 = vmul.f32 %v60, %v60
    %v64 = vand.u32 2147483647, %v58
    %vm65 = vcmp.le.f32.partialorder %v64, 0.7853982
    %vm66 = vcmp.lt.s32.totalorder %v58, 0
    %v67 = vand.u32 %v58, 2139095040
    %v68 = vshrl.u32 %v67, 23
    %v69 = vsub.s32 %v68, 127
    %v70 = vand.u32 2147483647, %v58
    %v71 = vand.u32 %v70, 8388607
    %v72 = vor.u32 %v71, 8388608
    %v73 = vsub.s32 0, %v72
    %v74 = vadd.s32 %v69, 1
    %vm75 = vcmp.gt.s32.totalorder %v74, 0
    %v76 = vsel %vm75, %v74, 0
    %v77 = vshrl.u32 %v76, 5
    %v78 = vand.u32 %v76, 31
    %v79 = vsub.s32 32, %v78
    %v80 = vshrl.u32 683565275, %v79
    %v81 = vshll.u32 683565275, %v78
    %v82 = vshrl.u32 2475754826, %v79
    %v83 = vor.u32 %v81, %v82
    %v84 = vshll.u32 2475754826, %v78
    %v85 = vshrl.u32 2131351028, %v79
    %v86 = vor.u32 %v84, %v85
    %v87 = vshll.u32 2131351028, %v78
    %v88 = vshrl.u32 2102212464, %v79
    %v89 = vor.u32 %v87, %v88
    %v90 = vshll.u32 2102212464, %v78
    %v91 = vshrl.u32 920167782, %v79
    %v92 = vor.u32 %v90, %v91
    %v93 = vshll.u32 920167782, %v78
    %v94 = vshrl.u32 1326507024, %v79
    %v95 = vor.u32 %v93, %v94
    %vm96 = vcmp.lt.s32.totalorder %v77, 1
    %vm97 = vcmp.lt.s32.totalorder %v77, 2
    %vm98 = vcmp.lt.s32.totalorder %v77, 3
    %vm99 = vcmp.lt.s32.totalorder %v77, 4
    %v100 = vsel %vm96, %v80, %v83
    %v101 = vsel %vm99, %v89, 2102212464
    %v102 = vsel %vm98, %v86, %v101
    %v103 = vsel %vm97, %v100, %v102
    %v104 = vsel %vm96, %v83, %v86
    %v105 = vsel %vm99, %v92, 920167782
    %v106 = vsel %vm98, %v89, %v105
    %v107 = vsel %vm97, %v104, %v106
    %v108 = vsel %vm96, %v86, %v89
    %v109 = vsel %vm99, %v95, 1326507024
    %v110 = vsel %vm98, %v92, %v109
    %v111 = vsel %vm97, %v108, %v110
    %v112 = vshll.u32 %v72, 8
    %v113 = vand.u32 %v112, 65535
    %v114 = vshrl.u32 %v112, 16
    %v115 = vand.u32 %v111, 65535
    %v116 = vshrl.u32 %v111, 16
    %v117 = vmul.u32 %v113, %v115
    %v118 = vmul.u32 %v113, %v116
    %v119 = vmul.u32 %v114, %v115
    %v120 = vmul.u32 %v114, %v116
    %v121 = vshll.u32 %v118, 16
    %v122 = vshrl.u32 %v118, 16
    %v123 = vshll.u32 %v119, 16
    %v124 = vshrl.u32 %v119, 16
    %vm125 = vc.u32 %v117, %v121
    %v126 = vsel %vm125, 1, 0
    %v127 = vadd.s32 %v117, %v121
    %v128 = vadd.s32 %v120, %v126
    %vm129 = vc.u32 %v127, %v123
    %v130 = vsel %vm129, 1, 0
    %v131 = vadd.s32 %v127, %v123
    %v132 = vadd.s32 %v128, %v130
    %v133 = vadd.s32 %v132, %v122
    %v134 = vadd.s32 %v133, %v124
    %v135 = vand.u32 %v112, 65535
    %v136 = vshrl.u32 %v112, 16
    %v137 = vand.u32 %v107, 65535
    %v138 = vshrl.u32 %v107, 16
    %v139 = vmul.u32 %v135, %v137
    %v140 = vmul.u32 %v135, %v138
    %v141 = vmul.u32 %v136, %v137
    %v142 = vmul.u32 %v136, %v138
    %v143 = vshll.u32 %v140, 16
    %v144 = vshrl.u32 %v140, 16
    %v145 = vshll.u32 %v141, 16
    %v146 = vshrl.u32 %v141, 16
    %vm147 = vc.u32 %v139, %v143
    %v148 = vsel %vm147, 1, 0
    %v149 = vadd.s32 %v139, %v143
    %v150 = vadd.s32 %v142, %v148
    %vm151 = vc.u32 %v149, %v145
    %v152 = vsel %vm151, 1, 0
    %v153 = vadd.s32 %v149, %v145
    %v154 = vadd.s32 %v150, %v152
    %v155 = vadd.s32 %v154, %v144
    %v156 = vadd.s32 %v155, %v146
    %v157 = vmul.u32 %v112, %v103
    %v158 = vadd.s32 %v134, %v153
    %vm159 = vc.u32 %v134, %v153
    %v160 = vadd.s32 %v156, 1
    %v161 = vsel %vm159, %v160, %v156
    %v162 = vadd.s32 %v157, %v161
    %v163 = vadd.s32 %v162, 536870912
    %v164 = vshrl.u32 %v163, 30
    %v165 = vshll.u32 %v164, 30
    %v166 = vsub.s32 %v162, %v165
    %vm167 = vcmp.lt.s32.totalorder %v166, 0
    %v168 = vsub.s32 0, %v166
    %v169 = vsel %vm167, %v168, %v166
    %v170 = vclz %v169
    %v171 = vsub.s32 %v170, 2
    %vm172 = vcmp.gt.s32.totalorder 0, %v171
    %v173 = vsel %vm172, 0, %v171
    %v174 = vsub.s32 32, %v173
    %v175 = vshll.u32 %v166, %v173
    %v176 = vshrl.u32 %v158, %v174
    %v177 = vor.u32 %v175, %v176
    %v178 = vsub.s32 4294967266, %v173
    %v179 = vadd.s32 %v178, 127
    %v180 = vshll.u32 %v179, 23
    %v181 = vor.u32 4788187, %v180
    %v182 = vand.u32 2147483647, %v181
    %v184 = vcvt.s32.f32 %v177
    %v185 = vmul.f32 %v184, %v182
    %v186 = vxor.u32 %v185, 2147483648
    %v187 = vsel %vm66, %v186, %v185
    %v188 = vsub.s32 4, %v164
    %v189 = vsel %vm66, %v188, %v164
    %v190 = vsel %vm65, %v58, %v187
    %v191 = vsel %vm65, 0, %v189
    %v192 = vmul.f32 %v190, %v190
    %v193 = vmul.f32 %v192, -0.001358992
    %v194 = vadd.f32 %v193, 0.041655596
    %v195 = vmul.f32 %v192, %v194
    %v196 = vadd.f32 %v195, -0.4999988
    %v197 = vmul.f32 %v192, %v196
    %v198 = vadd.f32 1.0, %v197
    %v199 = vmul.f32 %v190, %v190
    %v200 = vmul.f32 %v199, -0.00019511016
    %v201 = vadd.f32 %v200, 0.008332121
    %v202 = vmul.f32 %v199, %v201
    %v203 = vadd.f32 %v202, -0.16666654
    %v204 = vmul.f32 %v199, %v203
    %v205 = vadd.f32 %v204, 1.0
    %v206 = vmul.f32 %v205, %v190
    %vm207 = vweird.f32 %v58
    %v208 = vand.u32 %v191, 3
    %vm209 = vcmp.lt.s32.totalorder %v208, 2
    %vm210 = vcmp.eq.s32.totalorder %v208, 0
    %v211 = vxor.u32 %v206, 2147483648
    %v212 = vsel %vm210, %v198, %v211
    %vm213 = vcmp.eq.s32.totalorder %v208, 2
    %v214 = vxor.u32 %v198, 2147483648
    %v215 = vsel %vm213, %v214, %v206
    %v216 = vsel %vm209, %v212, %v215
    %v217 = vsel %vm207, nan, %v216
    %v218 = vsub.f32 1.0, %v217
    %v219 = vlaneseq
    %v220 = vshrl.u32 %v219, 7
    %v221 = vlaneseq
    %v222 = vand.u32 %v221, 127
    %vm223 = vcmp.eq.s32.totalorder %v220, 0
    %vm224 = vcmp.lt.s32.totalorder %v222, 3
    %vm225 = vmand %vm223, %vm224
    %vm226 = vcmp.eq.s32.totalorder %v220, 1
    %vm227 = vcmp.ge.s32.totalorder %v222, 16
    %vm228 = vmand %vm226, %vm227
    %v229 = vsel %vm228, 1.0, 0.0
    %v230 = vsel %vm225, 1.0, %v229
    %vm231 = vcmask 261120
    %v233 = vsel %vm231, %v230, 0
    %235 = vmatpush.msra.mxu0 0.0
    %236 = vmatpush.msra.mxu0 0.0
    %237 = vmatpush.msra.mxu0 0.0
    %238 = vmatpush.msra.mxu0 0.0
    %239 = vmatpush.msra.mxu0 0.0
    %240 = vmatpush.msra.mxu0 0.0
    %241 = vmatpush.msra.mxu0 0.0
    %242 = vmatpush.msra.mxu0 0.0
    %243 = vmatpush.msra.mxu0 0.0
    %244 = vmatpush.msra.mxu0 0.0
    %245 = vmatpush.msra.mxu0 0.0
    %246 = vmatpush.msra.mxu0 0.0
    %v247 = vand.u32 %v63, 4294901760
    %248 = vmatpush.msra.mxu0 %v247
    %v249 = vand.u32 %v62, 4294901760
    %250 = vmatpush.msra.mxu0 %v249
    %v251 = vand.u32 %v61, 4294901760
    %252 = vmatpush.msra.mxu0 %v251
    %v253 = vand.u32 %v218, 4294901760
    %254 = vmatpush.msra.mxu0 %v253
    %v255 = vand.u32 %v233, 4294901760
    %v256 = vsub.f32 %v233, %v255
    %v257 = vand.u32 %v256, 4294901760
    %v258 = vsub.f32 %v256, %v257
    %v259 = vand.u32 %v258, 4294901760
    %260 = vmatmul.f32.gmra.mxu0 %v259
    %v261 = vpop.f32.mrf.mxu0
    %v262 = vadd.f32 0.0, %v261
    %263 = vdwg.mxu0
    %264 = vmatpush.msra.mxu0 0.0
    %265 = vmatpush.msra.mxu0 0.0
    %266 = vmatpush.msra.mxu0 0.0
    %267 = vmatpush.msra.mxu0 0.0
    %268 = vmatpush.msra.mxu0 0.0
    %269 = vmatpush.msra.mxu0 0.0
    %270 = vmatpush.msra.mxu0 0.0
    %271 = vmatpush.msra.mxu0 0.0
    %272 = vmatpush.msra.mxu0 0.0
    %273 = vmatpush.msra.mxu0 0.0
    %274 = vmatpush.msra.mxu0 0.0
    %275 = vmatpush.msra.mxu0 0.0
    %v276 = vand.u32 %v63, 4294901760
    %v277 = vsub.f32 %v63, %v276
    %v278 = vand.u32 %v277, 4294901760
    %v279 = vsub.f32 %v277, %v278
    %v280 = vand.u32 %v279, 4294901760
    %281 = vmatpush.msra.mxu0 %v280
    %v282 = vand.u32 %v62, 4294901760
    %v283 = vsub.f32 %v62, %v282
    %v284 = vand.u32 %v283, 4294901760
    %v285 = vsub.f32 %v283, %v284
    %v286 = vand.u32 %v285, 4294901760
    %287 = vmatpush.msra.mxu0 %v286
    %v288 = vand.u32 %v61, 4294901760
    %v289 = vsub.f32 %v61, %v288
    %v290 = vand.u32 %v289, 4294901760
    %v291 = vsub.f32 %v289, %v290
    %v292 = vand.u32 %v291, 4294901760
    %293 = vmatpush.msra.mxu0 %v292
    %v294 = vand.u32 %v218, 4294901760
    %v295 = vsub.f32 %v218, %v294
    %v296 = vand.u32 %v295, 4294901760
    %v297 = vsub.f32 %v295, %v296
    %v298 = vand.u32 %v297, 4294901760
    %299 = vmatpush.msra.mxu0 %v298
    %v300 = vand.u32 %v233, 4294901760
    %301 = vmatmul.f32.gmra.mxu0 %v300
    %v302 = vpop.f32.mrf.mxu0
    %v303 = vadd.f32 %v262, %v302
    %304 = vdwg.mxu0
    %305 = vmatpush.msra.mxu0 0.0
    %306 = vmatpush.msra.mxu0 0.0
    %307 = vmatpush.msra.mxu0 0.0
    %308 = vmatpush.msra.mxu0 0.0
    %309 = vmatpush.msra.mxu0 0.0
    %310 = vmatpush.msra.mxu0 0.0
    %311 = vmatpush.msra.mxu0 0.0
    %312 = vmatpush.msra.mxu0 0.0
    %313 = vmatpush.msra.mxu0 0.0
    %314 = vmatpush.msra.mxu0 0.0
    %315 = vmatpush.msra.mxu0 0.0
    %316 = vmatpush.msra.mxu0 0.0
    %v317 = vand.u32 %v63, 4294901760
    %v318 = vsub.f32 %v63, %v317
    %319 = vmatpush.msra.mxu0 %v318
    %v320 = vand.u32 %v62, 4294901760
    %v321 = vsub.f32 %v62, %v320
    %322 = vmatpush.msra.mxu0 %v321
    %v323 = vand.u32 %v61, 4294901760
    %v324 = vsub.f32 %v61, %v323
    %325 = vmatpush.msra.mxu0 %v324
    %v326 = vand.u32 %v218, 4294901760
    %v327 = vsub.f32 %v218, %v326
    %328 = vmatpush.msra.mxu0 %v327
    %v329 = vand.u32 %v233, 4294901760
    %v330 = vsub.f32 %v233, %v329
    %331 = vmatmul.f32.gmra.mxu0 %v330
    %v332 = vpop.f32.mrf.mxu0
    %v333 = vadd.f32 %v303, %v332
    %334 = vdwg.mxu0
    %335 = vmatpush.msra.mxu0 0.0
    %336 = vmatpush.msra.mxu0 0.0
    %337 = vmatpush.msra.mxu0 0.0
    %338 = vmatpush.msra.mxu0 0.0
    %339 = vmatpush.msra.mxu0 0.0
    %340 = vmatpush.msra.mxu0 0.0
    %341 = vmatpush.msra.mxu0 0.0
    %342 = vmatpush.msra.mxu0 0.0
    %343 = vmatpush.msra.mxu0 0.0
    %344 = vmatpush.msra.mxu0 0.0
    %345 = vmatpush.msra.mxu0 0.0
    %346 = vmatpush.msra.mxu0 0.0
    %v347 = vand.u32 %v63, 4294901760
    %348 = vmatpush.msra.mxu0 %v347
    %v349 = vand.u32 %v62, 4294901760
    %350 = vmatpush.msra.mxu0 %v349
    %v351 = vand.u32 %v61, 4294901760
    %352 = vmatpush.msra.mxu0 %v351
    %v353 = vand.u32 %v218, 4294901760
    %354 = vmatpush.msra.mxu0 %v353
    %v355 = vand.u32 %v233, 4294901760
    %v356 = vsub.f32 %v233, %v355
    %v357 = vand.u32 %v356, 4294901760
    %358 = vmatmul.f32.gmra.mxu0 %v357
    %v359 = vpop.f32.mrf.mxu0
    %v360 = vadd.f32 %v333, %v359
    %361 = vdwg.mxu0
    %362 = vmatpush.msra.mxu0 0.0
    %363 = vmatpush.msra.mxu0 0.0
    %364 = vmatpush.msra.mxu0 0.0
    %365 = vmatpush.msra.mxu0 0.0
    %366 = vmatpush.msra.mxu0 0.0
    %367 = vmatpush.msra.mxu0 0.0
    %368 = vmatpush.msra.mxu0 0.0
    %369 = vmatpush.msra.mxu0 0.0
    %370 = vmatpush.msra.mxu0 0.0
    %371 = vmatpush.msra.mxu0 0.0
    %372 = vmatpush.msra.mxu0 0.0
    %373 = vmatpush.msra.mxu0 0.0
    %v374 = vand.u32 %v63, 4294901760
    %v375 = vsub.f32 %v63, %v374
    %v376 = vand.u32 %v375, 4294901760
    %377 = vmatpush.msra.mxu0 %v376
    %v378 = vand.u32 %v62, 4294901760
    %v379 = vsub.f32 %v62, %v378
    %v380 = vand.u32 %v379, 4294901760
    %381 = vmatpush.msra.mxu0 %v380
    %v382 = vand.u32 %v61, 4294901760
    %v383 = vsub.f32 %v61, %v382
    %v384 = vand.u32 %v383, 4294901760
    %385 = vmatpush.msra.mxu0 %v384
    %v386 = vand.u32 %v218, 4294901760
    %v387 = vsub.f32 %v218, %v386
    %v388 = vand.u32 %v387, 4294901760
    %389 = vmatpush.msra.mxu0 %v388
    %v390 = vand.u32 %v233, 4294901760
    %391 = vmatmul.f32.gmra.mxu0 %v390
    %v392 = vpop.f32.mrf.mxu0
    %v393 = vadd.f32 %v360, %v392
    %394 = vdwg.mxu0
    %395 = vmatpush.msra.mxu0 0.0
    %396 = vmatpush.msra.mxu0 0.0
    %397 = vmatpush.msra.mxu0 0.0
    %398 = vmatpush.msra.mxu0 0.0
    %399 = vmatpush.msra.mxu0 0.0
    %400 = vmatpush.msra.mxu0 0.0
    %401 = vmatpush.msra.mxu0 0.0
    %402 = vmatpush.msra.mxu0 0.0
    %403 = vmatpush.msra.mxu0 0.0
    %404 = vmatpush.msra.mxu0 0.0
    %405 = vmatpush.msra.mxu0 0.0
    %406 = vmatpush.msra.mxu0 0.0
    %v407 = vand.u32 %v63, 4294901760
    %408 = vmatpush.msra.mxu0 %v407
    %v409 = vand.u32 %v62, 4294901760
    %410 = vmatpush.msra.mxu0 %v409
    %v411 = vand.u32 %v61, 4294901760
    %412 = vmatpush.msra.mxu0 %v411
    %v413 = vand.u32 %v218, 4294901760
    %414 = vmatpush.msra.mxu0 %v413
    %v415 = vand.u32 %v233, 4294901760
    %416 = vmatmul.f32.gmra.mxu0 %v415
    %v417 = vpop.f32.mrf.mxu0
    %v418 = vadd.f32 %v393, %v417
    %419 = vdwg.mxu0
    %v421 = vrot.slane %v418, 1
    %v423 = vmul.f32 %v418, %v421
    %v424 = vperm.slane %v423, 0
    %v425 = vsel %vm223, 1.0, %v424
    %426 = vmatpush.xpose.msra.mxu0 0.0
    %427 = vmatpush.xpose.msra.mxu0 0.0
    %428 = vmatpush.xpose.msra.mxu0 0.0
    %429 = vmatpush.xpose.msra.mxu0 0.0
    %430 = vmatpush.xpose.msra.mxu0 0.0
    %431 = vmatpush.xpose.msra.mxu0 0.0
    %432 = vmatpush.xpose.msra.mxu0 0.0
    %433 = vmatpush.xpose.msra.mxu0 0.0
    %434 = vmatpush.xpose.msra.mxu0 0.0
    %435 = vmatpush.xpose.msra.mxu0 0.0
    %436 = vmatpush.xpose.msra.mxu0 0.0
    %437 = vmatpush.xpose.msra.mxu0 0.0
    %438 = vmatpush.xpose.msra.mxu0 0.0
    %v439 = vand.u32 %v60, 4294901760
    %440 = vmatpush.xpose.msra.mxu0 %v439
    %v441 = vand.u32 %v59, 4294901760
    %442 = vmatpush.xpose.msra.mxu0 %v441
    %v443 = vand.u32 %v58, 4294901760
    %444 = vmatpush.xpose.msra.mxu0 %v443
    %v445 = vand.u32 %v425, 4294901760
    %v446 = vsub.f32 %v425, %v445
    %v447 = vand.u32 %v446, 4294901760
    %v448 = vsub.f32 %v446, %v447
    %v449 = vand.u32 %v448, 4294901760
    %450 = vmatmul.f32.gmra.mxu0 %v449
    %v451 = vpop.f32.mrf.mxu0
    %v452 = vadd.f32 0.0, %v451
    %453 = vdwg.mxu0
    %454 = vmatpush.xpose.msra.mxu0 0.0
    %455 = vmatpush.xpose.msra.mxu0 0.0
    %456 = vmatpush.xpose.msra.mxu0 0.0
    %457 = vmatpush.xpose.msra.mxu0 0.0
    %458 = vmatpush.xpose.msra.mxu0 0.0
    %459 = vmatpush.xpose.msra.mxu0 0.0
    %460 = vmatpush.xpose.msra.mxu0 0.0
    %461 = vmatpush.xpose.msra.mxu0 0.0
    %462 = vmatpush.xpose.msra.mxu0 0.0
    %463 = vmatpush.xpose.msra.mxu0 0.0
    %464 = vmatpush.xpose.msra.mxu0 0.0
    %465 = vmatpush.xpose.msra.mxu0 0.0
    %466 = vmatpush.xpose.msra.mxu0 0.0
    %v467 = vand.u32 %v60, 4294901760
    %v468 = vsub.f32 %v60, %v467
    %v469 = vand.u32 %v468, 4294901760
    %v470 = vsub.f32 %v468, %v469
    %v471 = vand.u32 %v470, 4294901760
    %472 = vmatpush.xpose.msra.mxu0 %v471
    %v473 = vand.u32 %v59, 4294901760
    %v474 = vsub.f32 %v59, %v473
    %v475 = vand.u32 %v474, 4294901760
    %v476 = vsub.f32 %v474, %v475
    %v477 = vand.u32 %v476, 4294901760
    %478 = vmatpush.xpose.msra.mxu0 %v477
    %v479 = vand.u32 %v58, 4294901760
    %v480 = vsub.f32 %v58, %v479
    %v481 = vand.u32 %v480, 4294901760
    %v482 = vsub.f32 %v480, %v481
    %v483 = vand.u32 %v482, 4294901760
    %484 = vmatpush.xpose.msra.mxu0 %v483
    %v485 = vand.u32 %v425, 4294901760
    %486 = vmatmul.f32.gmra.mxu0 %v485
    %v487 = vpop.f32.mrf.mxu0
    %v488 = vadd.f32 %v452, %v487
    %489 = vdwg.mxu0
    %490 = vmatpush.xpose.msra.mxu0 0.0
    %491 = vmatpush.xpose.msra.mxu0 0.0
    %492 = vmatpush.xpose.msra.mxu0 0.0
    %493 = vmatpush.xpose.msra.mxu0 0.0
    %494 = vmatpush.xpose.msra.mxu0 0.0
    %495 = vmatpush.xpose.msra.mxu0 0.0
    %496 = vmatpush.xpose.msra.mxu0 0.0
    %497 = vmatpush.xpose.msra.mxu0 0.0
    %498 = vmatpush.xpose.msra.mxu0 0.0
    %499 = vmatpush.xpose.msra.mxu0 0.0
    %500 = vmatpush.xpose.msra.mxu0 0.0
    %501 = vmatpush.xpose.msra.mxu0 0.0
    %502 = vmatpush.xpose.msra.mxu0 0.0
    %v503 = vand.u32 %v60, 4294901760
    %v504 = vsub.f32 %v60, %v503
    %505 = vmatpush.xpose.msra.mxu0 %v504
    %v506 = vand.u32 %v59, 4294901760
    %v507 = vsub.f32 %v59, %v506
    %508 = vmatpush.xpose.msra.mxu0 %v507
    %v509 = vand.u32 %v58, 4294901760
    %v510 = vsub.f32 %v58, %v509
    %511 = vmatpush.xpose.msra.mxu0 %v510
    %v512 = vand.u32 %v425, 4294901760
    %v513 = vsub.f32 %v425, %v512
    %514 = vmatmul.f32.gmra.mxu0 %v513
    %v515 = vpop.f32.mrf.mxu0
    %v516 = vadd.f32 %v488, %v515
    %517 = vdwg.mxu0
    %518 = vmatpush.xpose.msra.mxu0 0.0
    %519 = vmatpush.xpose.msra.mxu0 0.0
    %520 = vmatpush.xpose.msra.mxu0 0.0
    %521 = vmatpush.xpose.msra.mxu0 0.0
    %522 = vmatpush.xpose.msra.mxu0 0.0
    %523 = vmatpush.xpose.msra.mxu0 0.0
    %524 = vmatpush.xpose.msra.mxu0 0.0
    %525 = vmatpush.xpose.msra.mxu0 0.0
    %526 = vmatpush.xpose.msra.mxu0 0.0
    %527 = vmatpush.xpose.msra.mxu0 0.0
    %528 = vmatpush.xpose.msra.mxu0 0.0
    %529 = vmatpush.xpose.msra.mxu0 0.0
    %530 = vmatpush.xpose.msra.mxu0 0.0
    %v531 = vand.u32 %v60, 4294901760
    %532 = vmatpush.xpose.msra.mxu0 %v531
    %v533 = vand.u32 %v59, 4294901760
    %534 = vmatpush.xpose.msra.mxu0 %v533
    %v535 = vand.u32 %v58, 4294901760
    %536 = vmatpush.xpose.msra.mxu0 %v535
    %v537 = vand.u32 %v425, 4294901760
    %v538 = vsub.f32 %v425, %v537
    %v539 = vand.u32 %v538, 4294901760
    %540 = vmatmul.f32.gmra.mxu0 %v539
    %v541 = vpop.f32.mrf.mxu0
    %v542 = vadd.f32 %v516, %v541
    %543 = vdwg.mxu0
    %544 = vmatpush.xpose.msra.mxu0 0.0
    %545 = vmatpush.xpose.msra.mxu0 0.0
    %546 = vmatpush.xpose.msra.mxu0 0.0
    %547 = vmatpush.xpose.msra.mxu0 0.0
    %548 = vmatpush.xpose.msra.mxu0 0.0
    %549 = vmatpush.xpose.msra.mxu0 0.0
    %550 = vmatpush.xpose.msra.mxu0 0.0
    %551 = vmatpush.xpose.msra.mxu0 0.0
    %552 = vmatpush.xpose.msra.mxu0 0.0
    %553 = vmatpush.xpose.msra.mxu0 0.0
    %554 = vmatpush.xpose.msra.mxu0 0.0
    %555 = vmatpush.xpose.msra.mxu0 0.0
    %556 = vmatpush.xpose.msra.mxu0 0.0
    %v557 = vand.u32 %v60, 4294901760
    %v558 = vsub.f32 %v60, %v557
    %v559 = vand.u32 %v558, 4294901760
    %560 = vmatpush.xpose.msra.mxu0 %v559
    %v561 = vand.u32 %v59, 4294901760
    %v562 = vsub.f32 %v59, %v561
    %v563 = vand.u32 %v562, 4294901760
    %564 = vmatpush.xpose.msra.mxu0 %v563
    %v565 = vand.u32 %v58, 4294901760
    %v566 = vsub.f32 %v58, %v565
    %v567 = vand.u32 %v566, 4294901760
    %568 = vmatpush.xpose.msra.mxu0 %v567
    %v569 = vand.u32 %v425, 4294901760
    %570 = vmatmul.f32.gmra.mxu0 %v569
    %v571 = vpop.f32.mrf.mxu0
    %v572 = vadd.f32 %v542, %v571
    %573 = vdwg.mxu0
    %574 = vmatpush.xpose.msra.mxu0 0.0
    %575 = vmatpush.xpose.msra.mxu0 0.0
    %576 = vmatpush.xpose.msra.mxu0 0.0
    %577 = vmatpush.xpose.msra.mxu0 0.0
    %578 = vmatpush.xpose.msra.mxu0 0.0
    %579 = vmatpush.xpose.msra.mxu0 0.0
    %580 = vmatpush.xpose.msra.mxu0 0.0
    %581 = vmatpush.xpose.msra.mxu0 0.0
    %582 = vmatpush.xpose.msra.mxu0 0.0
    %583 = vmatpush.xpose.msra.mxu0 0.0
    %584 = vmatpush.xpose.msra.mxu0 0.0
    %585 = vmatpush.xpose.msra.mxu0 0.0
    %586 = vmatpush.xpose.msra.mxu0 0.0
    %v587 = vand.u32 %v60, 4294901760
    %588 = vmatpush.xpose.msra.mxu0 %v587
    %v589 = vand.u32 %v59, 4294901760
    %590 = vmatpush.xpose.msra.mxu0 %v589
    %v591 = vand.u32 %v58, 4294901760
    %592 = vmatpush.xpose.msra.mxu0 %v591
    %v593 = vand.u32 %v425, 4294901760
    %594 = vmatmul.f32.gmra.mxu0 %v593
    %v595 = vpop.f32.mrf.mxu0
    %v596 = vadd.f32 %v572, %v595
    %597 = vdwg.mxu0
    %v598 = vld [vmem:[#allocation2] sm:$0x3]
    %v599 = vadd.f32 %v598, %v596
    %vm600 = vcmask 189440
    %601 = vst.msk [vmem:[#allocation2] sm:$0x3] %vm600, %v599
    %v602 = vld [vmem:[#allocation3] sm:$0x1]
    %vm603 = vcmask 1041409
    %v604 = vsel %vm603, %v418, 0.0
    %605 = vadd.xlane.f32.xlu0 %v604
    %v606 = vpop.xlane.xlu0 %605
    %v608 = vperm.slane %v606, 1
    %v610 = vadd.f32 %v602, %v608
    %vm611 = vcmask 0
    %612 = vst.msk [vmem:[#allocation3] sm:$0x1] %vm611, %v610
    // Predicated region
    $region22: #{tpu_custom_call.1} parent=1 // pred_check
      %p613 = pneg %p44
    $region23: #{tpu_custom_call.1} parent=1 // pred_check_branch
      %615 = sbr.rel (%p613) target = $region25
    $region24: #{tpu_custom_call.1} parent=1 // pred_region
      %v616 = vld [vmem:[#allocation2] sm:$0x3]
      %vm617 = vcmp.ge.s32.totalorder %v222, 3
      %vm618 = vcmp.lt.s32.totalorder %v222, 8
      %vm619 = vmand %vm617, %vm618
      %v620 = vmul.f32 %v616, 0.125
      %vm621 = vcmp.gt.f32.partialorder %v620, 0.0
      %v622 = vsel %vm621, %v620, 1.0
      %v623 = vrcp.pop %v622
      %v624 = vmul.f32 %v622, %v623
      %v625 = vsub.f32 1.0, %v624
      %v626 = vmul.f32 %v623, %v625
      %v627 = vadd.f32 %v623, %v626
      %vm628 = vweird.f32 %v622
      %vm629 = vweird.f32 %v623
      %vm630 = vmor %vm628, %vm629
      %v631 = vsel %vm630, %v623, %v627
      %v632 = vand.u32 2147483647, %v622
      %vm633 = vcmp.eq.f32.partialorder %v632, 8.507059e+37
      %v634 = vand.u32 %v622, 2147483648
      %v635 = vor.u32 1.1754944e-38, %v634
      %v636 = vsel %vm633, %v635, %v631
      %v637 = vsel %vm621, %v636, 8.0
      %v639 = vrot.slane %v616, 1
      %v641 = vmul.f32 %v637, %v639
      %v642 = vsel %vm619, %v641, 0.0
      %vm643 = vcmask 188416
      %v644 = vsel %vm643, %v642, 0.0
      %645 = vadd.xlane.f32.xlu0 %v644
      %v646 = vpop.xlane.xlu0 %645
      %v647 = vmul.f32 %v646, 0.125
      %v648 = vld [vmem:[#allocation3] sm:$0x1]
      %v649 = vmul.f32 %v648, 0.125
      %vm650 = vcmp.eq.s32.totalorder %v222, 0
      %652 = vset.pattern.permute.xlu0 0
      %653 = vperm.xlu0 %652, %v649
      %v654 = vpop.permute.xlu0 %653
      %v656 = vperm.slane %v654, 0
      %v657 = vsel %vm650, %v647, %v656
      %vm658 = vcmask 8192
      %659 = vst.msk [vmem:[#allocation9] sm:$0x1] %vm658, %v657
    $region25: #{tpu_custom_call.1} parent=1 // pred_fallthru
      _
    // Predicated region
    $region26: #{tpu_custom_call.1} parent=1 // pred_check
      _
    $region27: #{tpu_custom_call.1} parent=1 // pred_check_branch
      %661 = sbr.rel (0) target = $region29
    $region28: #{tpu_custom_call.1} parent=1 // pred_region
      %663 = vsyncadd [#allocation6], 0
      %s665 = sshll.u32 [#allocation9], 4
      %s666 = int_to_ptr.vmem [resolvable:$true] %s665
      %s667 = sshll.u32 %s2, 4
      %s668 = int_to_ptr.hbm [resolvable:$true] %s667
      %670 = dma.vmem_to_hbm [thread:$0]  %s666, 16, %s668, [#allocation6]
    $region29: #{tpu_custom_call.1} parent=1 // pred_fallthru
      _
    // Predicated region
    $region30: #{tpu_custom_call.1} parent=1 // pred_check
      _
    $region31: #{tpu_custom_call.1} parent=1 // pred_check_branch
      %672 = sbr.rel (0) target = $region33
    $region32: #{tpu_custom_call.1} parent=1 // pred_region
      %674 = dma.done [#allocation6], 16
    $region33: #{tpu_custom_call.1} parent=1 // pred_fallthru
      _
    %675 = vsyncpa [#allocation5], 1
    %676 = vsyncpa [#allocation8], 1
    %677 = vsyncpa [#allocation6], 1

</llo_original>
